<compile_context>
chip_gen: v5e
topology: v5e:2x2
jax: 0.10.0
libtpu: 0.0.40
codegen_flags: <defaults>
</compile_context>

<pallas_src>
from functools import partial

import numpy as np
import jax
import jax.numpy as jnp
from jax import lax
from jax.experimental import pallas as pl
from jax.experimental.pallas import tpu as pltpu

# ----- small T5-like config -----
B = 2            # batch
S = 8            # sequence length
D_MODEL = 32     # d_model
N_HEADS = 4      # num heads
D_KV = 8         # per-head dim
INNER = N_HEADS * D_KV   # 32
D_FF = 64        # feed-forward dim
NUM_BUCKETS = 32
MAX_DISTANCE = 128
EPS = 1e-6


# ---------------- Pallas kernel: one T5 block, one batch element per grid step ----------------
def _t5_block_kernel(x_ref, pb_ref, ln1_ref, wqkv_ref, wo_ref,
                     ln2_ref, wi_ref, wff_ref, out_ref, *, mxu_dtype):
    # x_ref    : (S, D_MODEL)        current batch element, f32
    # pb_ref   : (H, S, S)           rel-bias + attention mask, f32
    # wqkv_ref : (D_MODEL, 3*INNER)  packed [Wq | Wk | Wv], mxu_dtype
    # wo_ref   : (INNER, D_MODEL)    mxu_dtype
    # wi_ref   : (D_MODEL, D_FF)  /  wff_ref : (D_FF, D_MODEL)   mxu_dtype
    x = x_ref[...]                                                   # (S, D) f32

    # ---- self-attention sub-layer ----
    # T5LayerNorm: RMS norm (no mean subtraction, no bias); stats in f32.
    var = jnp.mean(x * x, axis=-1, keepdims=True)
    xn = x * lax.rsqrt(var + EPS) * ln1_ref[...]                     # (S, D) f32

    # ONE fused MXU push for Q|K|V: contraction D_MODEL, 3*INNER output lanes.
    qkv = jnp.dot(xn.astype(mxu_dtype), wqkv_ref[...],
                  preferred_element_type=jnp.float32)                # (S, 3*INNER) f32

    def split_heads(col0):
        # lane window [col0, col0+INNER) -> head-leading (H, S, D_KV)
        return jnp.stack(
            [qkv[:, col0 + h * D_KV: col0 + (h + 1) * D_KV] for h in range(N_HEADS)],
            axis=0).astype(mxu_dtype)

    q = split_heads(0)                      # (H, S, D_KV)
    k = split_heads(INNER)
    v = split_heads(2 * INNER)

    # NOTE: T5 does NOT scale scores by 1/sqrt(d_kv).
    sc = jnp.einsum('hqd,hkd->hqk', q, k,
                    preferred_element_type=jnp.float32) + pb_ref[...]   # (H, S, S) f32
    m = jnp.max(sc, axis=-1, keepdims=True)
    e = jnp.exp(sc - m)
    denom = jnp.sum(e, axis=-1, keepdims=True)
    w = e * pl.reciprocal(denom, approx=False)   # exact recip (still EUP) -> HF parity
    ctx = jnp.einsum('hqk,hkd->hqd', w.astype(mxu_dtype), v,
                     preferred_element_type=jnp.float32)             # (H, S, D_KV) f32

    # heads packed along lanes -> ONE output-projection matmul, contraction=INNER
    ctx2d = jnp.concatenate([ctx[h] for h in range(N_HEADS)], axis=1)  # (S, INNER)
    h1 = x + jnp.dot(ctx2d.astype(mxu_dtype), wo_ref[...],
                     preferred_element_type=jnp.float32)             # residual, f32

    # ---- feed-forward sub-layer (DenseReluDense) ----
    var2 = jnp.mean(h1 * h1, axis=-1, keepdims=True)
    h1n = h1 * lax.rsqrt(var2 + EPS) * ln2_ref[...]
    mid = jnp.maximum(
        jnp.dot(h1n.astype(mxu_dtype), wi_ref[...],
                preferred_element_type=jnp.float32), 0.0)
    ff = jnp.dot(mid.astype(mxu_dtype), wff_ref[...],
                 preferred_element_type=jnp.float32)
    out_ref[...] = h1 + ff                                           # residual
    # TODO(synk): at production S, add query-tile ("parallel") x key-tile
    # ("arbitrary") grid axes with an online-softmax VMEM accumulator (flash
    # style); at S=8 (a single sublane tile) that only adds per-step overhead.
    # At production D_MODEL (>=512) the output is already lane-dense (>=128).


# ---------------- relative position bias buckets (static, numpy, trace-time) ----------------
def _relative_position_bucket(relative_position, num_buckets=NUM_BUCKETS,
                              max_distance=MAX_DISTANCE):
    # bidirectional (encoder) variant of HF T5Attention._relative_position_bucket
    relative_buckets = np.zeros_like(relative_position)
    num_buckets //= 2
    relative_buckets += (relative_position > 0).astype(np.int64) * num_buckets
    relative_position = np.abs(relative_position)
    max_exact = num_buckets // 2
    is_small = relative_position < max_exact
    rp_large = max_exact + (
        np.log(np.maximum(relative_position, 1).astype(np.float64) / max_exact)
        / np.log(max_distance / max_exact) * (num_buckets - max_exact)
    ).astype(np.int64)
    rp_large = np.minimum(rp_large, num_buckets - 1)
    relative_buckets += np.where(is_small, relative_position, rp_large)
    return relative_buckets


def compute_rel_bias(bias_table):
    # bias_table: (NUM_BUCKETS, N_HEADS) -> (N_HEADS, S, S)
    ctx = np.arange(S)[:, None]
    mem = np.arange(S)[None, :]
    buckets = _relative_position_bucket(mem - ctx)          # (S, S) int (static)
    vals = bias_table[buckets]                               # (S, S, H)
    return jnp.transpose(vals, (2, 0, 1))                    # (H, S, S)


# ---------------- pallas_call wrapper ----------------
def t5_block_pallas(hidden, position_bias, params, mxu_dtype=jnp.float32):
    # static weight prep / packing (outside the kernel)
    wqkv = jnp.concatenate(
        [params["q_w"], params["k_w"], params["v_w"]], axis=1).astype(mxu_dtype)  # (D, 3*INNER)
    wo = params["o_w"].astype(mxu_dtype)        # (INNER, D)
    wi = params["wi_w"].astype(mxu_dtype)       # (D, D_FF)
    wff = params["wo_w"].astype(mxu_dtype)      # (D_FF, D)
    ln1 = params["ln1_w"].astype(jnp.float32)   # (1, D)
    ln2 = params["ln2_w"].astype(jnp.float32)

    kernel = partial(_t5_block_kernel, mxu_dtype=mxu_dtype)

    def resident(shape):
        # same block index every grid step -> stays VMEM-resident across steps
        return pl.BlockSpec(shape, lambda b: (0,) * len(shape))

    grid_spec = pltpu.PrefetchScalarGridSpec(
        num_scalar_prefetch=0,
        grid=(B,),   # batch axis; "parallel" -> shards across both TCs on v7x
        in_specs=[
            pl.BlockSpec((None, S, D_MODEL), lambda b: (b, 0, 0)),         # x[b]
            pl.BlockSpec((None, N_HEADS, S, S), lambda b: (b, 0, 0, 0)),   # position_bias[b]
            resident((1, D_MODEL)),                                        # ln1
            resident((D_MODEL, 3 * INNER)),                                # Wqkv packed
            resident((INNER, D_MODEL)),                                    # Wo (attn out proj)
            resident((1, D_MODEL)),                                        # ln2
            resident((D_MODEL, D_FF)),                                     # Wi
            resident((D_FF, D_MODEL)),                                     # Wff
        ],
        out_specs=pl.BlockSpec((None, S, D_MODEL), lambda b: (b, 0, 0)),
    )

    return pl.pallas_call(
        kernel,
        out_shape=jax.ShapeDtypeStruct((B, S, D_MODEL), jnp.float32),
        grid_spec=grid_spec,
        compiler_params=pltpu.CompilerParams(
            dimension_semantics=("parallel",)),
    )(hidden, position_bias, ln1, wqkv, wo, ln2, wi, wff)


def t5_block_pipe_encoder_forward(encoder_attention_mask, extended_attention_mask,
                                  encoder_hidden_states, params,
                                  mxu_dtype=jnp.float32):
    """Mirrors T5BlockPipe._encoder_forward for block_idx == 0 (encoder)."""
    rel_bias = compute_rel_bias(params["rel_bias_table"])              # (H, S, S)
    # position_bias returned by the block includes the attention mask (HF-exact)
    position_bias = (rel_bias[None, :, :, :]
                     + extended_attention_mask.reshape(B, 1, 1, S))    # (B, H, S, S)
    out_hidden = t5_block_pallas(encoder_hidden_states, position_bias, params, mxu_dtype)
    # same tuple structure as T5BlockPipe._encoder_forward (block_idx == 0)
    return (encoder_attention_mask, extended_attention_mask, position_bias, out_hidden)
    # TODO(synk): decoder path (_decoder_forward, cross-attention) not implemented.


# ---------------- pure-JAX reference (HF math; same MXU-boundary casts) ----------------
def t5_block_reference(x, position_bias, params, mxu_dtype=jnp.float32):
    c = lambda t: t.astype(mxu_dtype)

    def rms(v, w):
        var = jnp.mean(v * v, axis=-1, keepdims=True)
        return v * lax.rsqrt(var + EPS) * w.reshape(-1)

    def mm(a, b):
        return jnp.einsum('...i,io->...o', c(a), c(b),
                          preferred_element_type=jnp.float32)

    xn = rms(x, params["ln1_w"])
    q, k, v = mm(xn, params["q_w"]), mm(xn, params["k_w"]), mm(xn, params["v_w"])

    def split(t):
        return t.reshape(B, S, N_HEADS, D_KV).transpose(0, 2, 1, 3)

    qh, kh, vh = split(q), split(k), split(v)
    sc = jnp.einsum('bhqd,bhkd->bhqk', c(qh), c(kh),
                    preferred_element_type=jnp.float32) + position_bias
    w = jax.nn.softmax(sc, axis=-1)
    at = jnp.einsum('bhqk,bhkd->bhqd', c(w), c(vh),
                    preferred_element_type=jnp.float32)
    at = at.transpose(0, 2, 1, 3).reshape(B, S, INNER)
    h1 = x + mm(at, params["o_w"])
    h1n = rms(h1, params["ln2_w"])
    ff = mm(jnp.maximum(mm(h1n, params["wi_w"]), 0.0), params["wo_w"])
    return h1 + ff


def init_params(key):
    # init_all(self, torch.nn.init.normal_, mean=0.0, std=1) -> everything N(0, 1)
    ks = jax.random.split(key, 9)
    return {
        "ln1_w": jax.random.normal(ks[0], (1, D_MODEL), jnp.float32),
        "q_w":   jax.random.normal(ks[1], (D_MODEL, INNER), jnp.float32),
        "k_w":   jax.random.normal(ks[2], (D_MODEL, INNER), jnp.float32),
        "v_w":   jax.random.normal(ks[3], (D_MODEL, INNER), jnp.float32),
        "o_w":   jax.random.normal(ks[4], (INNER, D_MODEL), jnp.float32),
        "ln2_w": jax.random.normal(ks[5], (1, D_MODEL), jnp.float32),
        "wi_w":  jax.random.normal(ks[6], (D_MODEL, D_FF), jnp.float32),
        "wo_w":  jax.random.normal(ks[7], (D_FF, D_MODEL), jnp.float32),
        "rel_bias_table": jax.random.normal(ks[8], (NUM_BUCKETS, N_HEADS), jnp.float32),
    }


if __name__ == "__main__":
    key = jax.random.PRNGKey(0)
    k_in, k_par = jax.random.split(key)

    encoder_hidden_states = jax.random.normal(k_in, (B, S, D_MODEL), jnp.float32)
    # binary attention mask: batch 0 fully attended, batch 1 masks the last 2 keys
    enc_mask = np.ones((B, S), np.float32)
    enc_mask[1, -2:] = 0.0
    encoder_attention_mask = jnp.asarray(enc_mask)
    # HF get_extended_attention_mask uses finfo(dtype).min
    extended_attention_mask = (
        (1.0 - encoder_attention_mask) * jnp.finfo(jnp.float32).min
    ).reshape(B, 1, 1, S)

    params = init_params(k_par)

    # --- f32 MXU path (HF-parity; v5e-style all-f32 elementwise) ---
    out = t5_block_pipe_encoder_forward(
        encoder_attention_mask, extended_attention_mask, encoder_hidden_states,
        params, mxu_dtype=jnp.float32)
    jax.block_until_ready(out)
    assert out[2].shape == (B, N_HEADS, S, S)
    assert out[3].shape == (B, S, D_MODEL)
    ref = t5_block_reference(encoder_hidden_states, out[2], params, jnp.float32)
    np.testing.assert_allclose(np.asarray(out[3]), np.asarray(ref),
                               rtol=2e-3, atol=5e-2)

    # --- bf16 MXU path (v6e / v7x fast path; f32 accumulation, f32 softmax) ---
    out16 = t5_block_pipe_encoder_forward(
        encoder_attention_mask, extended_attention_mask, encoder_hidden_states,
        params, mxu_dtype=jnp.bfloat16)
    jax.block_until_ready(out16)
    ref16 = t5_block_reference(encoder_hidden_states, out16[2], params, jnp.bfloat16)
    np.testing.assert_allclose(np.asarray(out16[3]), np.asarray(ref16),
                               rtol=5e-2, atol=5e-1)

    print("KERNEL_OK")
</pallas_src>

<mosaic_0001>
module attributes {stable_mosaic.version = 11 : i64} {
  func.func @_t5_block_kernel(%arg0: i32, %arg1: memref<1x8x32xf32, #tpu.memory_space<vmem>>, %arg2: memref<1x4x8x8xf32, #tpu.memory_space<vmem>>, %arg3: memref<1x32xf32, #tpu.memory_space<vmem>>, %arg4: memref<32x96xf32, #tpu.memory_space<vmem>>, %arg5: memref<32x32xf32, #tpu.memory_space<vmem>>, %arg6: memref<1x32xf32, #tpu.memory_space<vmem>>, %arg7: memref<32x64xf32, #tpu.memory_space<vmem>>, %arg8: memref<64x32xf32, #tpu.memory_space<vmem>>, %arg9: memref<1x8x32xf32, #tpu.memory_space<vmem>>) attributes {dimension_semantics = [#tpu.dimension_semantics<parallel>], iteration_bounds = array<i64: 2>, scalar_prefetch = 0 : i64, scratch_operands = 0 : i64, tpu.core_type = #tpu.core_type<tc>, window_params = [{transform_indices = @transform_0, window_bounds = array<i64: 1, 8, 32>}, {transform_indices = @transform_1, window_bounds = array<i64: 1, 4, 8, 8>}, {pipeline_mode = #tpu.pipeline_mode<synchronous>, transform_indices = @transform_2, window_bounds = array<i64: 1, 32>}, {pipeline_mode = #tpu.pipeline_mode<synchronous>, transform_indices = @transform_3, window_bounds = array<i64: 32, 96>}, {pipeline_mode = #tpu.pipeline_mode<synchronous>, transform_indices = @transform_4, window_bounds = array<i64: 32, 32>}, {pipeline_mode = #tpu.pipeline_mode<synchronous>, transform_indices = @transform_5, window_bounds = array<i64: 1, 32>}, {pipeline_mode = #tpu.pipeline_mode<synchronous>, transform_indices = @transform_6, window_bounds = array<i64: 32, 64>}, {pipeline_mode = #tpu.pipeline_mode<synchronous>, transform_indices = @transform_7, window_bounds = array<i64: 64, 32>}, {transform_indices = @transform_8, window_bounds = array<i64: 1, 8, 32>}]} {
    %c0 = arith.constant 0 : index
    %c0_0 = arith.constant 0 : index
    %c0_1 = arith.constant 0 : index
    %0 = vector.load %arg1[%c0, %c0_0, %c0_1] : memref<1x8x32xf32, #tpu.memory_space<vmem>>, vector<1x8x32xf32>
    %1 = vector.shape_cast %0 : vector<1x8x32xf32> to vector<8x32xf32>
    %2 = arith.mulf %1, %1 : vector<8x32xf32>
    %cst = arith.constant dense<0.000000e+00> : vector<8xf32>
    %3 = vector.multi_reduction <add>, %2, %cst [1] : vector<8x32xf32> to vector<8xf32>
    %4 = vector.shape_cast %3 : vector<8xf32> to vector<8x1xf32>
    %cst_2 = arith.constant 3.200000e+01 : f32
    %5 = vector.broadcast %cst_2 : f32 to vector<8x1xf32>
    %6 = arith.divf %4, %5 : vector<8x1xf32>
    %cst_3 = arith.constant 9.99999997E-7 : f32
    %7 = vector.broadcast %cst_3 : f32 to vector<8x1xf32>
    %8 = arith.addf %6, %7 : vector<8x1xf32>
    %9 = math.rsqrt %8 : vector<8x1xf32>
    %10 = vector.broadcast %9 : vector<8x1xf32> to vector<8x32xf32>
    %11 = arith.mulf %1, %10 : vector<8x32xf32>
    %c0_4 = arith.constant 0 : index
    %c0_5 = arith.constant 0 : index
    %12 = vector.load %arg3[%c0_4, %c0_5] : memref<1x32xf32, #tpu.memory_space<vmem>>, vector<1x32xf32>
    %13 = vector.broadcast %12 : vector<1x32xf32> to vector<8x32xf32>
    %14 = arith.mulf %11, %13 : vector<8x32xf32>
    %c0_6 = arith.constant 0 : index
    %c0_7 = arith.constant 0 : index
    %15 = vector.load %arg4[%c0_6, %c0_7] : memref<32x96xf32, #tpu.memory_space<vmem>>, vector<32x96xf32>
    %cst_8 = arith.constant dense<0.000000e+00> : vector<8x96xf32>
    %16 = tpu.matmul %14, %15, %cst_8 {dimension_numbers = #tpu.dot_dimension_numbers<[1], [0], [0], [1], [0, 0, 1, 1], [], []>} : vector<8x32xf32>, vector<32x96xf32>, vector<8x96xf32> -> vector<8x96xf32>
    %17 = vector.extract_strided_slice %16 {offsets = [0, 0], sizes = [8, 8], strides = [1, 1]} : vector<8x96xf32> to vector<8x8xf32>
    %18 = vector.extract_strided_slice %16 {offsets = [0, 8], sizes = [8, 8], strides = [1, 1]} : vector<8x96xf32> to vector<8x8xf32>
    %19 = vector.extract_strided_slice %16 {offsets = [0, 16], sizes = [8, 8], strides = [1, 1]} : vector<8x96xf32> to vector<8x8xf32>
    %20 = vector.extract_strided_slice %16 {offsets = [0, 24], sizes = [8, 8], strides = [1, 1]} : vector<8x96xf32> to vector<8x8xf32>
    %21 = vector.shape_cast %17 : vector<8x8xf32> to vector<1x8x8xf32>
    %22 = vector.shape_cast %18 : vector<8x8xf32> to vector<1x8x8xf32>
    %23 = vector.shape_cast %19 : vector<8x8xf32> to vector<1x8x8xf32>
    %24 = vector.shape_cast %20 : vector<8x8xf32> to vector<1x8x8xf32>
    %25 = tpu.concatenate %21, %22, %23, %24 in 0 : vector<1x8x8xf32>, vector<1x8x8xf32>, vector<1x8x8xf32>, vector<1x8x8xf32> -> vector<4x8x8xf32>
    %26 = vector.extract_strided_slice %16 {offsets = [0, 32], sizes = [8, 8], strides = [1, 1]} : vector<8x96xf32> to vector<8x8xf32>
    %27 = vector.extract_strided_slice %16 {offsets = [0, 40], sizes = [8, 8], strides = [1, 1]} : vector<8x96xf32> to vector<8x8xf32>
    %28 = vector.extract_strided_slice %16 {offsets = [0, 48], sizes = [8, 8], strides = [1, 1]} : vector<8x96xf32> to vector<8x8xf32>
    %29 = vector.extract_strided_slice %16 {offsets = [0, 56], sizes = [8, 8], strides = [1, 1]} : vector<8x96xf32> to vector<8x8xf32>
    %30 = vector.shape_cast %26 : vector<8x8xf32> to vector<1x8x8xf32>
    %31 = vector.shape_cast %27 : vector<8x8xf32> to vector<1x8x8xf32>
    %32 = vector.shape_cast %28 : vector<8x8xf32> to vector<1x8x8xf32>
    %33 = vector.shape_cast %29 : vector<8x8xf32> to vector<1x8x8xf32>
    %34 = tpu.concatenate %30, %31, %32, %33 in 0 : vector<1x8x8xf32>, vector<1x8x8xf32>, vector<1x8x8xf32>, vector<1x8x8xf32> -> vector<4x8x8xf32>
    %35 = vector.extract_strided_slice %16 {offsets = [0, 64], sizes = [8, 8], strides = [1, 1]} : vector<8x96xf32> to vector<8x8xf32>
    %36 = vector.extract_strided_slice %16 {offsets = [0, 72], sizes = [8, 8], strides = [1, 1]} : vector<8x96xf32> to vector<8x8xf32>
    %37 = vector.extract_strided_slice %16 {offsets = [0, 80], sizes = [8, 8], strides = [1, 1]} : vector<8x96xf32> to vector<8x8xf32>
    %38 = vector.extract_strided_slice %16 {offsets = [0, 88], sizes = [8, 8], strides = [1, 1]} : vector<8x96xf32> to vector<8x8xf32>
    %39 = vector.shape_cast %35 : vector<8x8xf32> to vector<1x8x8xf32>
    %40 = vector.shape_cast %36 : vector<8x8xf32> to vector<1x8x8xf32>
    %41 = vector.shape_cast %37 : vector<8x8xf32> to vector<1x8x8xf32>
    %42 = vector.shape_cast %38 : vector<8x8xf32> to vector<1x8x8xf32>
    %43 = tpu.concatenate %39, %40, %41, %42 in 0 : vector<1x8x8xf32>, vector<1x8x8xf32>, vector<1x8x8xf32>, vector<1x8x8xf32> -> vector<4x8x8xf32>
    "tpu.trace_start"() <{level = 10 : i32, message = "hqd,hkd->hqk"}> : () -> ()
    %cst_9 = arith.constant dense<0.000000e+00> : vector<4x8x8xf32>
    %44 = tpu.matmul %25, %34, %cst_9 {dimension_numbers = #tpu.dot_dimension_numbers<[2], [2], [1], [1], [0, 0, 0, 1, 1, 1], [0], [0]>} : vector<4x8x8xf32>, vector<4x8x8xf32>, vector<4x8x8xf32> -> vector<4x8x8xf32>
    "tpu.trace_stop"() : () -> ()
    %c0_10 = arith.constant 0 : index
    %c0_11 = arith.constant 0 : index
    %c0_12 = arith.constant 0 : index
    %c0_13 = arith.constant 0 : index
    %45 = vector.load %arg2[%c0_10, %c0_11, %c0_12, %c0_13] : memref<1x4x8x8xf32, #tpu.memory_space<vmem>>, vector<1x4x8x8xf32>
    %46 = vector.shape_cast %45 : vector<1x4x8x8xf32> to vector<4x8x8xf32>
    %47 = arith.addf %44, %46 : vector<4x8x8xf32>
    %cst_14 = arith.constant dense<0xFF800000> : vector<4x8xf32>
    %48 = vector.multi_reduction <maximumf>, %47, %cst_14 [2] : vector<4x8x8xf32> to vector<4x8xf32>
    %49 = vector.shape_cast %48 : vector<4x8xf32> to vector<4x8x1xf32>
    %50 = vector.broadcast %49 : vector<4x8x1xf32> to vector<4x8x8xf32>
    %51 = arith.subf %47, %50 : vector<4x8x8xf32>
    %52 = math.exp %51 : vector<4x8x8xf32>
    %cst_15 = arith.constant dense<0.000000e+00> : vector<4x8xf32>
    %53 = vector.multi_reduction <add>, %52, %cst_15 [2] : vector<4x8x8xf32> to vector<4x8xf32>
    %54 = vector.shape_cast %53 : vector<4x8xf32> to vector<4x8x1xf32>
    %55 = tpu.reciprocal %54 : vector<4x8x1xf32> -> vector<4x8x1xf32>
    %56 = vector.broadcast %55 : vector<4x8x1xf32> to vector<4x8x8xf32>
    %57 = arith.mulf %52, %56 : vector<4x8x8xf32>
    "tpu.trace_start"() <{level = 10 : i32, message = "hqk,hkd->hqd"}> : () -> ()
    %cst_16 = arith.constant dense<0.000000e+00> : vector<4x8x8xf32>
    %58 = tpu.matmul %57, %43, %cst_16 {dimension_numbers = #tpu.dot_dimension_numbers<[2], [1], [1], [2], [0, 0, 0, 1, 1, 2], [0], [0]>} : vector<4x8x8xf32>, vector<4x8x8xf32>, vector<4x8x8xf32> -> vector<4x8x8xf32>
    "tpu.trace_stop"() : () -> ()
    %59 = vector.extract_strided_slice %58 {offsets = [0, 0, 0], sizes = [1, 8, 8], strides = [1, 1, 1]} : vector<4x8x8xf32> to vector<1x8x8xf32>
    %60 = vector.shape_cast %59 : vector<1x8x8xf32> to vector<8x8xf32>
    %61 = vector.extract_strided_slice %58 {offsets = [1, 0, 0], sizes = [1, 8, 8], strides = [1, 1, 1]} : vector<4x8x8xf32> to vector<1x8x8xf32>
    %62 = vector.shape_cast %61 : vector<1x8x8xf32> to vector<8x8xf32>
    %63 = vector.extract_strided_slice %58 {offsets = [2, 0, 0], sizes = [1, 8, 8], strides = [1, 1, 1]} : vector<4x8x8xf32> to vector<1x8x8xf32>
    %64 = vector.shape_cast %63 : vector<1x8x8xf32> to vector<8x8xf32>
    %65 = vector.extract_strided_slice %58 {offsets = [3, 0, 0], sizes = [1, 8, 8], strides = [1, 1, 1]} : vector<4x8x8xf32> to vector<1x8x8xf32>
    %66 = vector.shape_cast %65 : vector<1x8x8xf32> to vector<8x8xf32>
    %67 = tpu.concatenate %60, %62, %64, %66 in 1 : vector<8x8xf32>, vector<8x8xf32>, vector<8x8xf32>, vector<8x8xf32> -> vector<8x32xf32>
    %c0_17 = arith.constant 0 : index
    %c0_18 = arith.constant 0 : index
    %68 = vector.load %arg5[%c0_17, %c0_18] : memref<32x32xf32, #tpu.memory_space<vmem>>, vector<32x32xf32>
    %cst_19 = arith.constant dense<0.000000e+00> : vector<8x32xf32>
    %69 = tpu.matmul %67, %68, %cst_19 {dimension_numbers = #tpu.dot_dimension_numbers<[1], [0], [0], [1], [0, 0, 1, 1], [], []>} : vector<8x32xf32>, vector<32x32xf32>, vector<8x32xf32> -> vector<8x32xf32>
    %70 = arith.addf %1, %69 : vector<8x32xf32>
    %71 = arith.mulf %70, %70 : vector<8x32xf32>
    %cst_20 = arith.constant dense<0.000000e+00> : vector<8xf32>
    %72 = vector.multi_reduction <add>, %71, %cst_20 [1] : vector<8x32xf32> to vector<8xf32>
    %73 = vector.shape_cast %72 : vector<8xf32> to vector<8x1xf32>
    %cst_21 = arith.constant 3.200000e+01 : f32
    %74 = vector.broadcast %cst_21 : f32 to vector<8x1xf32>
    %75 = arith.divf %73, %74 : vector<8x1xf32>
    %cst_22 = arith.constant 9.99999997E-7 : f32
    %76 = vector.broadcast %cst_22 : f32 to vector<8x1xf32>
    %77 = arith.addf %75, %76 : vector<8x1xf32>
    %78 = math.rsqrt %77 : vector<8x1xf32>
    %79 = vector.broadcast %78 : vector<8x1xf32> to vector<8x32xf32>
    %80 = arith.mulf %70, %79 : vector<8x32xf32>
    %c0_23 = arith.constant 0 : index
    %c0_24 = arith.constant 0 : index
    %81 = vector.load %arg6[%c0_23, %c0_24] : memref<1x32xf32, #tpu.memory_space<vmem>>, vector<1x32xf32>
    %82 = vector.broadcast %81 : vector<1x32xf32> to vector<8x32xf32>
    %83 = arith.mulf %80, %82 : vector<8x32xf32>
    %c0_25 = arith.constant 0 : index
    %c0_26 = arith.constant 0 : index
    %84 = vector.load %arg7[%c0_25, %c0_26] : memref<32x64xf32, #tpu.memory_space<vmem>>, vector<32x64xf32>
    %cst_27 = arith.constant dense<0.000000e+00> : vector<8x64xf32>
    %85 = tpu.matmul %83, %84, %cst_27 {dimension_numbers = #tpu.dot_dimension_numbers<[1], [0], [0], [1], [0, 0, 1, 1], [], []>} : vector<8x32xf32>, vector<32x64xf32>, vector<8x64xf32> -> vector<8x64xf32>
    %cst_28 = arith.constant 0.000000e+00 : f32
    %86 = vector.broadcast %cst_28 : f32 to vector<8x64xf32>
    %87 = arith.maximumf %85, %86 : vector<8x64xf32>
    %c0_29 = arith.constant 0 : index
    %c0_30 = arith.constant 0 : index
    %88 = vector.load %arg8[%c0_29, %c0_30] : memref<64x32xf32, #tpu.memory_space<vmem>>, vector<64x32xf32>
    %cst_31 = arith.constant dense<0.000000e+00> : vector<8x32xf32>
    %89 = tpu.matmul %87, %88, %cst_31 {dimension_numbers = #tpu.dot_dimension_numbers<[1], [0], [0], [1], [0, 0, 1, 1], [], []>} : vector<8x64xf32>, vector<64x32xf32>, vector<8x32xf32> -> vector<8x32xf32>
    %90 = arith.addf %70, %89 : vector<8x32xf32>
    %c0_32 = arith.constant 0 : index
    %c0_33 = arith.constant 0 : index
    %c0_34 = arith.constant 0 : index
    %91 = vector.load %arg9[%c0_32, %c0_33, %c0_34] : memref<1x8x32xf32, #tpu.memory_space<vmem>>, vector<1x8x32xf32>
    %92 = vector.shape_cast %91 : vector<1x8x32xf32> to vector<8x32xf32>
    %93 = vector.shape_cast %90 : vector<8x32xf32> to vector<1x8x32xf32>
    tpu.vector_store %arg9[%c0_32, %c0_33, %c0_34], %93 {strides = array<i32>} : memref<1x8x32xf32, #tpu.memory_space<vmem>>, vector<1x8x32xf32>,
    return
  }
  func.func @transform_0(%arg0: i32) -> (i32, i32, i32) {
    %c0_i32 = arith.constant 0 : i32
    %c0_i32_0 = arith.constant 0 : i32
    %c0_i32_1 = arith.constant 0 : i32
    return %arg0, %c0_i32, %c0_i32_0 : i32, i32, i32
  }
  func.func @transform_1(%arg0: i32) -> (i32, i32, i32, i32) {
    %c0_i32 = arith.constant 0 : i32
    %c0_i32_0 = arith.constant 0 : i32
    %c0_i32_1 = arith.constant 0 : i32
    %c0_i32_2 = arith.constant 0 : i32
    return %arg0, %c0_i32, %c0_i32_0, %c0_i32_1 : i32, i32, i32, i32
  }
  func.func @transform_2(%arg0: i32) -> (i32, i32) {
    %c0_i32 = arith.constant 0 : i32
    %c0_i32_0 = arith.constant 0 : i32
    %c0_i32_1 = arith.constant 0 : i32
    return %c0_i32, %c0_i32_0 : i32, i32
  }
  func.func @transform_3(%arg0: i32) -> (i32, i32) {
    %c0_i32 = arith.constant 0 : i32
    %c0_i32_0 = arith.constant 0 : i32
    %c0_i32_1 = arith.constant 0 : i32
    return %c0_i32, %c0_i32_0 : i32, i32
  }
  func.func @transform_4(%arg0: i32) -> (i32, i32) {
    %c0_i32 = arith.constant 0 : i32
    %c0_i32_0 = arith.constant 0 : i32
    %c0_i32_1 = arith.constant 0 : i32
    return %c0_i32, %c0_i32_0 : i32, i32
  }
  func.func @transform_5(%arg0: i32) -> (i32, i32) {
    %c0_i32 = arith.constant 0 : i32
    %c0_i32_0 = arith.constant 0 : i32
    %c0_i32_1 = arith.constant 0 : i32
    return %c0_i32, %c0_i32_0 : i32, i32
  }
  func.func @transform_6(%arg0: i32) -> (i32, i32) {
    %c0_i32 = arith.constant 0 : i32
    %c0_i32_0 = arith.constant 0 : i32
    %c0_i32_1 = arith.constant 0 : i32
    return %c0_i32, %c0_i32_0 : i32, i32
  }
  func.func @transform_7(%arg0: i32) -> (i32, i32) {
    %c0_i32 = arith.constant 0 : i32
    %c0_i32_0 = arith.constant 0 : i32
    %c0_i32_1 = arith.constant 0 : i32
    return %c0_i32, %c0_i32_0 : i32, i32
  }
  func.func @transform_8(%arg0: i32) -> (i32, i32, i32) {
    %c0_i32 = arith.constant 0 : i32
    %c0_i32_0 = arith.constant 0 : i32
    %c0_i32_1 = arith.constant 0 : i32
    return %arg0, %c0_i32, %c0_i32_0 : i32, i32, i32
  }
}

</mosaic_0001>

<llo_original>
// kernel: tpu_custom_call.1
$region0: #{tpu_custom_call.1}
  #allocation0 [shape = 'u32[]', space=smem, size = 0x4, offset = 0x4, fixed_abs, tag = 'smem constant byte address 0x4 - core index']
  #allocation1 [shape = 'u32[72,128]{1,0:T(1,128)}', space=vmem, size = 0x9000, scoped, tag = 'internal scratch']
  %s0 = inlined_call_operand.hbm [shape: f32[2,8,32], index: 0, kind: input, shape index: {}]
  %s1 = inlined_call_operand.vmem [shape: f32[2,4,8,8], index: 1, kind: input, shape index: {}]
  %s2 = inlined_call_operand.vmem [shape: f32[1,32], index: 2, kind: input, shape index: {}]
  %s3 = inlined_call_operand.vmem [shape: f32[32,96], index: 3, kind: input, shape index: {}]
  %s4 = inlined_call_operand.hbm [shape: f32[32,32], index: 4, kind: input, shape index: {}]
  %s5 = inlined_call_operand.vmem [shape: f32[1,32], index: 5, kind: input, shape index: {}]
  %s6 = inlined_call_operand.hbm [shape: f32[32,64], index: 6, kind: input, shape index: {}]
  %s7 = inlined_call_operand.vmem [shape: f32[64,32], index: 7, kind: input, shape index: {}]
  %s8 = inlined_call_operand.hbm [shape: f32[2,8,32], index: 8, kind: output, shape index: {}]
  %s9 = sld [smem:[#allocation0]]
  $region77: #{tpu_custom_call.1} parent=0
    _
  %s11 = ssub.s32 1, %s9
  %s12 = scalar_select 0, %s11, %s9
  $region1: #{tpu_custom_call.1} parent=0
    #allocation2 [shape = 'u8[8192]{0}', space=vmem, size = 0x2000, scoped, tag = 'input window, operand 0']
    #allocation3 [shape = 's32[2]{0}', space=sflag, size = 0x8, scoped, tag = 'scoped memory for tpu_custom_call.1']
    #allocation4 [shape = 's32[2]{0}', space=sflag, size = 0x8, scoped, tag = 'scoped memory for tpu_custom_call.1']
    #allocation5 [shape = 'u8[16384]{0}', space=vmem, size = 0x4000, scoped, tag = 'input window, operand 4, single buffered']
    #allocation6 [shape = 's32[1]{0}', space=sflag, size = 0x4, scoped, tag = 'scoped memory for tpu_custom_call.1']
    #allocation7 [shape = 'u8[16384]{0}', space=vmem, size = 0x4000, scoped, tag = 'input window, operand 6, single buffered']
    #allocation8 [shape = 'u8[8192]{0}', space=vmem, size = 0x2000, scoped, tag = 'output window, operand 0']
    %13 = vsyncpa [#allocation3], 0
    %s14 = scalar_lea.sflag [#allocation3], 1
    %15 = vsyncpa %s14, 0
    %16 = vsyncpa [#allocation6], 0
    %17 = vsyncpa [#allocation4], 0
    %s18 = scalar_lea.sflag [#allocation4], 1
    %19 = vsyncpa %s18, 0
    loop: start=0, step=1, limit=4
    $region2: #{tpu_custom_call.1} parent=1 // loop_pre_header
      _
    $region3: #{tpu_custom_call.1} parent=1 // loop_header
      %s21 = sphi 0, %s25
      %p22 = scmp.ge.s32.totalorder %s21, 4
      %s31 = sphi 0, %s33
      %s34 = sphi 0, %s31
      %s35 = sphi 0, %s34
      %s51 = sphi 0, %s35
      %s57 = sphi 0, %s59
      %s60 = sphi 0, %s57
      %s61 = sphi 0, %s60
      %s77 = sphi 0, %s61
      %s81 = sphi 0, %s81
      %s83 = sphi 0, %s81
      %s84 = sphi 0, %s83
      %s98 = sphi 0, %s84
      %s102 = sphi 0, %s102
      %s104 = sphi 0, %s102
      %s105 = sphi 0, %s104
      %s119 = sphi 0, %s105
      %s123 = sphi 0, %s123
      %s125 = sphi 0, %s123
      %s126 = sphi 0, %s125
      %s140 = sphi 0, %s126
      %s144 = sphi 0, %s144
      %s146 = sphi 0, %s144
      %s147 = sphi 0, %s146
      %s161 = sphi 0, %s147
      %s165 = sphi 0, %s165
      %s167 = sphi 0, %s165
      %s168 = sphi 0, %s167
      %s182 = sphi 0, %s168
      %s186 = sphi 0, %s186
      %s188 = sphi 0, %s186
      %s189 = sphi 0, %s188
      %s203 = sphi 0, %s189
      %s209 = sphi 0, %s211
      %s212 = sphi 0, %s209
      %s213 = sphi 0, %s212
      %s229 = sphi 0, %s213
    $region4: #{tpu_custom_call.1} parent=1 // loop_header_branch
      %24 = sbr.rel (%p22) target = $region8
    $region5: #{tpu_custom_call.1} parent=1 // loop_body
      %s26 = ssub.s32 %s21, 1
      %s27 = ssub.s32 %s21, 2
      %s28 = sadd.s32 %s21, 1
      %s29 = ssub.s32 %s21, %s28
      %p30 = scmp.eq.s32.totalorder %s29, 0
      %s32 = sadd.s32 %s31, 1
      %s33 = scalar_select %p30, %s31, %s32
      %p36 = pneg %p30
      %p37 = scmp.eq.s32.totalorder %s21, 1
      %p38 = por %p36, %p37
      %p39 = scmp.ne.s32.totalorder %s31, %s34
      %p40 = scmp.eq.s32.totalorder %s21, 0
      %p41 = por %p39, %p40
      %p42 = scmp.ne.s32.totalorder %s31, %s34
      %p43 = scmp.eq.s32.totalorder %s26, 1
      %p44 = por %p42, %p43
      %p45 = scmp.ne.s32.totalorder %s34, %s35
      %p46 = scmp.eq.s32.totalorder %s26, 0
      %p47 = por %p45, %p46
      %p48 = scmp.ne.s32.totalorder %s34, %s35
      %p49 = scmp.eq.s32.totalorder %s27, 1
      %p50 = por %p48, %p49
      %p52 = scmp.ne.s32.totalorder %s35, %s51
      %p53 = scmp.eq.s32.totalorder %s27, 0
      %p54 = por %p52, %p53
      %s55 = ssub.s32 %s21, %s28
      %p56 = scmp.eq.s32.totalorder %s55, 0
      %s58 = sadd.s32 %s57, 1
      %s59 = scalar_select %p56, %s57, %s58
      %p62 = pneg %p56
      %p63 = scmp.eq.s32.totalorder %s21, 1
      %p64 = por %p62, %p63
      %p65 = scmp.ne.s32.totalorder %s57, %s60
      %p66 = scmp.eq.s32.totalorder %s21, 0
      %p67 = por %p65, %p66
      %p68 = scmp.ne.s32.totalorder %s57, %s60
      %p69 = scmp.eq.s32.totalorder %s26, 1
      %p70 = por %p68, %p69
      %p71 = scmp.ne.s32.totalorder %s60, %s61
      %p72 = scmp.eq.s32.totalorder %s26, 0
      %p73 = por %p71, %p72
      %p74 = scmp.ne.s32.totalorder %s60, %s61
      %p75 = scmp.eq.s32.totalorder %s27, 1
      %p76 = por %p74, %p75
      %p78 = scmp.ne.s32.totalorder %s61, %s77
      %p79 = scmp.eq.s32.totalorder %s27, 0
      %p80 = por %p78, %p79
      %s82 = sadd.s32 %s81, 1
      %p85 = scmp.eq.s32.totalorder %s21, 1
      %p86 = scmp.ne.s32.totalorder %s81, %s83
      %p87 = scmp.eq.s32.totalorder %s21, 0
      %p88 = por %p86, %p87
      %p89 = scmp.ne.s32.totalorder %s81, %s83
      %p90 = scmp.eq.s32.totalorder %s26, 1
      %p91 = por %p89, %p90
      %p92 = scmp.ne.s32.totalorder %s83, %s84
      %p93 = scmp.eq.s32.totalorder %s26, 0
      %p94 = por %p92, %p93
      %p95 = scmp.ne.s32.totalorder %s83, %s84
      %p96 = scmp.eq.s32.totalorder %s27, 1
      %p97 = por %p95, %p96
      %p99 = scmp.ne.s32.totalorder %s84, %s98
      %p100 = scmp.eq.s32.totalorder %s27, 0
      %p101 = por %p99, %p100
      %s103 = sadd.s32 %s102, 1
      %p106 = scmp.eq.s32.totalorder %s21, 1
      %p107 = scmp.ne.s32.totalorder %s102, %s104
      %p108 = scmp.eq.s32.totalorder %s21, 0
      %p109 = por %p107, %p108
      %p110 = scmp.ne.s32.totalorder %s102, %s104
      %p111 = scmp.eq.s32.totalorder %s26, 1
      %p112 = por %p110, %p111
      %p113 = scmp.ne.s32.totalorder %s104, %s105
      %p114 = scmp.eq.s32.totalorder %s26, 0
      %p115 = por %p113, %p114
      %p116 = scmp.ne.s32.totalorder %s104, %s105
      %p117 = scmp.eq.s32.totalorder %s27, 1
      %p118 = por %p116, %p117
      %p120 = scmp.ne.s32.totalorder %s105, %s119
      %p121 = scmp.eq.s32.totalorder %s27, 0
      %p122 = por %p120, %p121
      %s124 = sadd.s32 %s123, 1
      %p127 = scmp.eq.s32.totalorder %s21, 1
      %p128 = scmp.ne.s32.totalorder %s123, %s125
      %p129 = scmp.eq.s32.totalorder %s21, 0
      %p130 = por %p128, %p129
      %p131 = scmp.ne.s32.totalorder %s123, %s125
      %p132 = scmp.eq.s32.totalorder %s26, 1
      %p133 = por %p131, %p132
      %p134 = scmp.ne.s32.totalorder %s125, %s126
      %p135 = scmp.eq.s32.totalorder %s26, 0
      %p136 = por %p134, %p135
      %p137 = scmp.ne.s32.totalorder %s125, %s126
      %p138 = scmp.eq.s32.totalorder %s27, 1
      %p139 = por %p137, %p138
      %p141 = scmp.ne.s32.totalorder %s126, %s140
      %p142 = scmp.eq.s32.totalorder %s27, 0
      %p143 = por %p141, %p142
      %s145 = sadd.s32 %s144, 1
      %p148 = scmp.eq.s32.totalorder %s21, 1
      %p149 = scmp.ne.s32.totalorder %s144, %s146
      %p150 = scmp.eq.s32.totalorder %s21, 0
      %p151 = por %p149, %p150
      %p152 = scmp.ne.s32.totalorder %s144, %s146
      %p153 = scmp.eq.s32.totalorder %s26, 1
      %p154 = por %p152, %p153
      %p155 = scmp.ne.s32.totalorder %s146, %s147
      %p156 = scmp.eq.s32.totalorder %s26, 0
      %p157 = por %p155, %p156
      %p158 = scmp.ne.s32.totalorder %s146, %s147
      %p159 = scmp.eq.s32.totalorder %s27, 1
      %p160 = por %p158, %p159
      %p162 = scmp.ne.s32.totalorder %s147, %s161
      %p163 = scmp.eq.s32.totalorder %s27, 0
      %p164 = por %p162, %p163
      %s166 = sadd.s32 %s165, 1
      %p169 = scmp.eq.s32.totalorder %s21, 1
      %p170 = scmp.ne.s32.totalorder %s165, %s167
      %p171 = scmp.eq.s32.totalorder %s21, 0
      %p172 = por %p170, %p171
      %p173 = scmp.ne.s32.totalorder %s165, %s167
      %p174 = scmp.eq.s32.totalorder %s26, 1
      %p175 = por %p173, %p174
      %p176 = scmp.ne.s32.totalorder %s167, %s168
      %p177 = scmp.eq.s32.totalorder %s26, 0
      %p178 = por %p176, %p177
      %p179 = scmp.ne.s32.totalorder %s167, %s168
      %p180 = scmp.eq.s32.totalorder %s27, 1
      %p181 = por %p179, %p180
      %p183 = scmp.ne.s32.totalorder %s168, %s182
      %p184 = scmp.eq.s32.totalorder %s27, 0
      %p185 = por %p183, %p184
      %s187 = sadd.s32 %s186, 1
      %p190 = scmp.eq.s32.totalorder %s21, 1
      %p191 = scmp.ne.s32.totalorder %s186, %s188
      %p192 = scmp.eq.s32.totalorder %s21, 0
      %p193 = por %p191, %p192
      %p194 = scmp.ne.s32.totalorder %s186, %s188
      %p195 = scmp.eq.s32.totalorder %s26, 1
      %p196 = por %p194, %p195
      %p197 = scmp.ne.s32.totalorder %s188, %s189
      %p198 = scmp.eq.s32.totalorder %s26, 0
      %p199 = por %p197, %p198
      %p200 = scmp.ne.s32.totalorder %s188, %s189
      %p201 = scmp.eq.s32.totalorder %s27, 1
      %p202 = por %p200, %p201
      %p204 = scmp.ne.s32.totalorder %s189, %s203
      %p205 = scmp.eq.s32.totalorder %s27, 0
      %p206 = por %p204, %p205
      %s207 = ssub.s32 %s21, %s28
      %p208 = scmp.eq.s32.totalorder %s207, 0
      %s210 = sadd.s32 %s209, 1
      %s211 = scalar_select %p208, %s209, %s210
      %p214 = pneg %p208
      %p215 = scmp.eq.s32.totalorder %s21, 1
      %p216 = por %p214, %p215
      %p217 = scmp.ne.s32.totalorder %s209, %s212
      %p218 = scmp.eq.s32.totalorder %s21, 0
      %p219 = por %p217, %p218
      %p220 = scmp.ne.s32.totalorder %s209, %s212
      %p221 = scmp.eq.s32.totalorder %s26, 1
      %p222 = por %p220, %p221
      %p223 = scmp.ne.s32.totalorder %s212, %s213
      %p224 = scmp.eq.s32.totalorder %s26, 0
      %p225 = por %p223, %p224
      %p226 = scmp.ne.s32.totalorder %s212, %s213
      %p227 = scmp.eq.s32.totalorder %s27, 1
      %p228 = por %p226, %p227
      %p230 = scmp.ne.s32.totalorder %s213, %s229
      %p231 = scmp.eq.s32.totalorder %s27, 0
      %p232 = por %p230, %p231
      %p233 = scmp.le.s32.totalorder 1, %s21
      %p234 = scmp.lt.s32.totalorder %s21, 3
      %p235 = pnand %p233, %p234
      %p236 = pneg %p235
      // Predicated region
      $region9: #{tpu_custom_call.1} parent=5 // pred_check
        _
      $region10: #{tpu_custom_call.1} parent=5 // pred_check_branch
        %238 = sbr.rel (%p235) target = $region12
      $region11: #{tpu_custom_call.1} parent=5 // pred_region
        %s239 = ssub.s32 %s21, 1
        // Predicated region
        $region13: #{tpu_custom_call.1} parent=11 // pred_check
          %p240 = pneg %p94
        $region14: #{tpu_custom_call.1} parent=11 // pred_check_branch
          %242 = sbr.rel (%p240) target = $region16
        $region15: #{tpu_custom_call.1} parent=11 // pred_region
          _
        $region16: #{tpu_custom_call.1} parent=11 // pred_fallthru
          _
        // Predicated region
        $region17: #{tpu_custom_call.1} parent=11 // pred_check
          %p243 = pneg %p115
        $region18: #{tpu_custom_call.1} parent=11 // pred_check_branch
          %245 = sbr.rel (%p243) target = $region20
        $region19: #{tpu_custom_call.1} parent=11 // pred_region
          _
        $region20: #{tpu_custom_call.1} parent=11 // pred_fallthru
          _
        // Predicated region
        $region21: #{tpu_custom_call.1} parent=11 // pred_check
          %p246 = pneg %p136
        $region22: #{tpu_custom_call.1} parent=11 // pred_check_branch
          %248 = sbr.rel (%p246) target = $region24
        $region23: #{tpu_custom_call.1} parent=11 // pred_region
          %250 = vsyncadd [#allocation6], 0
          %s251 = sshll.u32 %s4, 4
          %s252 = int_to_ptr.hbm [resolvable:$true] %s251
          %s253 = sshll.u32 [#allocation5], 4
          %s254 = int_to_ptr.vmem [resolvable:$true] %s253
          %259 = dma.hbm_to_vmem [thread:$0]  %s252, 512, %s254, [#allocation6], 128, 128, 8
        $region24: #{tpu_custom_call.1} parent=11 // pred_fallthru
          _
        // Predicated region
        $region25: #{tpu_custom_call.1} parent=11 // pred_check
          %p260 = pneg %p157
        $region26: #{tpu_custom_call.1} parent=11 // pred_check_branch
          %262 = sbr.rel (%p260) target = $region28
        $region27: #{tpu_custom_call.1} parent=11 // pred_region
          _
        $region28: #{tpu_custom_call.1} parent=11 // pred_fallthru
          _
        // Predicated region
        $region29: #{tpu_custom_call.1} parent=11 // pred_check
          %p263 = pneg %p178
        $region30: #{tpu_custom_call.1} parent=11 // pred_check_branch
          %265 = sbr.rel (%p263) target = $region32
        $region31: #{tpu_custom_call.1} parent=11 // pred_region
          %267 = vsyncadd [#allocation6], 0
          %s268 = sshll.u32 %s6, 4
          %s269 = int_to_ptr.hbm [resolvable:$true] %s268
          %s270 = sshll.u32 [#allocation7], 4
          %s271 = int_to_ptr.vmem [resolvable:$true] %s270
          %276 = dma.hbm_to_vmem [thread:$0]  %s269, 512, %s271, [#allocation6], 128, 128, 8
        $region32: #{tpu_custom_call.1} parent=11 // pred_fallthru
          _
        // Predicated region
        $region33: #{tpu_custom_call.1} parent=11 // pred_check
          %p277 = pneg %p199
        $region34: #{tpu_custom_call.1} parent=11 // pred_check_branch
          %279 = sbr.rel (%p277) target = $region36
        $region35: #{tpu_custom_call.1} parent=11 // pred_region
          _
        $region36: #{tpu_custom_call.1} parent=11 // pred_fallthru
          _
      $region12: #{tpu_custom_call.1} parent=5 // pred_fallthru
        _
      %p280 = scmp.lt.s32.totalorder %s21, 2
      // Predicated region
      $region37: #{tpu_custom_call.1} parent=5 // pred_check
        %p281 = pneg %p280
      $region38: #{tpu_custom_call.1} parent=5 // pred_check_branch
        %283 = sbr.rel (%p281) target = $region40
      $region39: #{tpu_custom_call.1} parent=5 // pred_region
        // Predicated region
        $region41: #{tpu_custom_call.1} parent=39 // pred_check
          %p284 = pneg %p41
        $region42: #{tpu_custom_call.1} parent=39 // pred_check_branch
          %286 = sbr.rel (%p284) target = $region44
        $region43: #{tpu_custom_call.1} parent=39 // pred_region
          %s287 = sand.u32 %s31, 1
          %s288 = scalar_lea.sflag [#allocation3], %s287
          %s289 = sand.u32 %s31, 1
          %s290 = smul.addr %s289, 8
          %s291 = scalar_lea.vmem [#allocation2], %s290
          %293 = vsyncadd %s288, 0
          %s294 = smul.addr %s21, 8
          %s295 = scalar_lea.hbm %s0, %s294
          %s297 = sshll.u32 %s295, 4
          %s298 = int_to_ptr.hbm [resolvable:$true] %s297
          %s299 = sshll.u32 %s291, 4
          %s300 = int_to_ptr.vmem [resolvable:$true] %s299
          %302 = dma.hbm_to_vmem [thread:$0]  %s298, 128, %s300, %s288
        $region44: #{tpu_custom_call.1} parent=39 // pred_fallthru
          _
        // Predicated region
        $region45: #{tpu_custom_call.1} parent=39 // pred_check
          %p303 = pneg %p67
        $region46: #{tpu_custom_call.1} parent=39 // pred_check_branch
          %305 = sbr.rel (%p303) target = $region48
        $region47: #{tpu_custom_call.1} parent=39 // pred_region
          %p306 = scmp.lt.s32.totalorder %s21, 1
          %s307 = scalar_select %p306, %s21, 1
          %s308 = smul.addr %s307, 4
          %s309 = smul.addr %s308, 8
          %s310 = scalar_lea.vmem %s1, %s309
        $region48: #{tpu_custom_call.1} parent=39 // pred_fallthru
          _
      $region40: #{tpu_custom_call.1} parent=5 // pred_fallthru
        _
      %p311 = scmp.le.s32.totalorder 1, %s21
      %p312 = scmp.lt.s32.totalorder %s21, 3
      %p313 = pnand %p311, %p312
      %p314 = pneg %p313
      // Predicated region
      $region49: #{tpu_custom_call.1} parent=5 // pred_check
        _
      $region50: #{tpu_custom_call.1} parent=5 // pred_check_branch
        %316 = sbr.rel (%p313) target = $region52
      $region51: #{tpu_custom_call.1} parent=5 // pred_region
        %s317 = ssub.s32 %s21, 1
        %s318 = sand.u32 %s34, 1
        %s319 = scalar_lea.sflag [#allocation3], %s318
        %s320 = sand.u32 %s34, 1
        %s321 = smul.addr %s320, 8
        %s322 = scalar_lea.vmem [#allocation2], %s321
        // Predicated region
        $region53: #{tpu_custom_call.1} parent=51 // pred_check
          %p323 = pneg %p47
        $region54: #{tpu_custom_call.1} parent=51 // pred_check_branch
          %325 = sbr.rel (%p323) target = $region56
        $region55: #{tpu_custom_call.1} parent=51 // pred_region
          %327 = dma.done %s319, 128
        $region56: #{tpu_custom_call.1} parent=51 // pred_fallthru
          _
        // Predicated region
        $region57: #{tpu_custom_call.1} parent=51 // pred_check
          %p328 = pneg %p136
        $region58: #{tpu_custom_call.1} parent=51 // pred_check_branch
          %330 = sbr.rel (%p328) target = $region60
        $region59: #{tpu_custom_call.1} parent=51 // pred_region
          %332 = dma.done [#allocation6], 512
        $region60: #{tpu_custom_call.1} parent=51 // pred_fallthru
          _
        // Predicated region
        $region61: #{tpu_custom_call.1} parent=51 // pred_check
          %p333 = pneg %p178
        $region62: #{tpu_custom_call.1} parent=51 // pred_check_branch
          %335 = sbr.rel (%p333) target = $region64
        $region63: #{tpu_custom_call.1} parent=51 // pred_region
          %337 = dma.done [#allocation6], 512
        $region64: #{tpu_custom_call.1} parent=51 // pred_fallthru
          _
        %s338 = sand.u32 %s34, 1
        %s339 = scalar_lea.sflag [#allocation3], %s338
        %s340 = sand.u32 %s34, 1
        %s341 = smul.addr %s340, 8
        %s342 = scalar_lea.vmem [#allocation2], %s341
        %p343 = pneg %p47
        %p344 = pneg %p44
        %p345 = scmp.lt.s32.totalorder %s26, 1
        %s346 = scalar_select %p345, %s26, 1
        %s347 = smul.addr %s346, 4
        %s348 = smul.addr %s347, 8
        %s349 = scalar_lea.vmem %s1, %s348
        %p350 = pneg %p73
        %p351 = pneg %p70
        %p352 = pneg %p94
        %p353 = pneg %p91
        %p354 = pneg %p115
        %p355 = pneg %p112
        %p356 = pneg %p136
        %p357 = pneg %p133
        %p358 = pneg %p157
        %p359 = pneg %p154
        %p360 = pneg %p178
        %p361 = pneg %p175
        %p362 = pneg %p199
        %p363 = pneg %p196
        %p364 = pneg %p225
        %p365 = pneg %p222
        %s366 = sand.u32 %s212, 1
        %s367 = scalar_lea.sflag [#allocation4], %s366
        %s368 = sand.u32 %s212, 1
        %s369 = smul.addr %s368, 8
        %s370 = scalar_lea.vmem [#allocation8], %s369
        %p371 = scmp.lt.s32.totalorder %s26, 1
        %s372 = scalar_select %p371, %s26, 1
        %s373 = smul.addr %s372, 4
        %s374 = smul.addr %s373, 8
        %s375 = scalar_lea.vmem %s1, %s374
        %v376 = vld [vmem:[%s322] sm:$0xff]
        %v377 = vmul.f32 %v376, %v376
        %vm378 = vcmask 261120
        %v379 = vsel %vm378, %v377, 0.0
        %380 = vadd.xlane.f32.xlu0 %v379
        %v381 = vpop.xlane.xlu0 %380
        %v382 = vrcp.pop 32.0
        %v383 = vmul.f32 32.0, %v382
        %v384 = vsub.f32 1.0, %v383
        %v385 = vmul.f32 %v382, %v384
        %v386 = vadd.f32 %v382, %v385
        %vm387 = vweird.f32 %v382
        %v388 = vsel %vm387, %v382, %v386
        %v389 = vmul.f32 %v381, %v388
        %v390 = vadd.f32 %v389, 1e-06
        %v391 = vrsqrt.pop %v390
        %v392 = vmul.f32 %v391, %v390
        %v393 = vmul.f32 %v392, %v391
        %v394 = vmul.f32 0.5, %v393
        %v395 = vsub.f32 1.5, %v394
        %v396 = vmul.f32 %v391, %v395
        %vm397 = vweird.f32 %v390
        %vm398 = vweird.f32 %v391
        %vm399 = vmor %vm397, %vm398
        %v400 = vsel %vm399, %v391, %v396
        %v401 = vmul.f32 %v376, %v400
        %v402 = vld [vmem:[%s2] sm:$0x1]
        %v404 = vperm.slane %v402, 0
        %v406 = vmul.f32 %v401, %v404
        %v407 = vld [vmem:[%s3] sm:$0xff]
        %v408 = vld [vmem:[%s3 + $0x8] sm:$0xff]
        %v409 = vld [vmem:[%s3 + $0x10] sm:$0xff]
        %v410 = vld [vmem:[%s3 + $0x18] sm:$0xff]
        %v412 = vsel %vm378, %v406, 0
        %414 = vmatpush.msra.mxu0 0.0
        %415 = vmatpush.msra.mxu0 0.0
        %416 = vmatpush.msra.mxu0 0.0
        %417 = vmatpush.msra.mxu0 0.0
        %418 = vmatpush.msra.mxu0 0.0
        %419 = vmatpush.msra.mxu0 0.0
        %420 = vmatpush.msra.mxu0 0.0
        %421 = vmatpush.msra.mxu0 0.0
        %422 = vmatpush.msra.mxu0 0.0
        %423 = vmatpush.msra.mxu0 0.0
        %424 = vmatpush.msra.mxu0 0.0
        %425 = vmatpush.msra.mxu0 0.0
        %426 = vmatpush.msra.mxu0 %v410
        %427 = vmatpush.msra.mxu0 %v409
        %428 = vmatpush.msra.mxu0 %v408
        %429 = vmatpush.msra.mxu0 %v407
        %430 = vmatmul.f32.gmra.mxu0 %v412
        %v431 = vpop.f32.mrf.mxu0
        %v432 = vadd.f32 0.0, %v431
        %433 = vdwg.mxu0
        %435 = vrot.lane.b32.xlu0 %v432, 120
        %v436 = vpop.permute.xlu0 %435
        %437 = vrot.lane.b32.xlu0 %v432, 112
        %v438 = vpop.permute.xlu0 %437
        %439 = vrot.lane.b32.xlu0 %v432, 104
        %v440 = vpop.permute.xlu0 %439
        %v441 = vld [vmem:[%s375] sm:$0xff]
        %v442 = vld [vmem:[%s375 + $0x8] sm:$0xff]
        %v443 = vld [vmem:[%s375 + $0x10] sm:$0xff]
        %v444 = vld [vmem:[%s375 + $0x18] sm:$0xff]
        %445 = vrot.lane.b32.xlu0 %v432, 96
        %v446 = vpop.permute.xlu0 %445
        %vm447 = vcmask 64512
        %v448 = vsel %vm447, %v432, 0
        %v450 = vsel %vm447, %v446, 0
        %452 = vmatpush.xpose.msra.mxu0 0.0
        %453 = vmatpush.xpose.msra.mxu0 0.0
        %454 = vmatpush.xpose.msra.mxu0 0.0
        %455 = vmatpush.xpose.msra.mxu0 0.0
        %456 = vmatpush.xpose.msra.mxu0 0.0
        %457 = vmatpush.xpose.msra.mxu0 0.0
        %458 = vmatpush.xpose.msra.mxu0 0.0
        %459 = vmatpush.xpose.msra.mxu0 0.0
        %460 = vmatpush.xpose.msra.mxu0 0.0
        %461 = vmatpush.xpose.msra.mxu0 0.0
        %462 = vmatpush.xpose.msra.mxu0 0.0
        %463 = vmatpush.xpose.msra.mxu0 0.0
        %464 = vmatpush.xpose.msra.mxu0 0.0
        %465 = vmatpush.xpose.msra.mxu0 0.0
        %466 = vmatpush.xpose.msra.mxu0 0.0
        %467 = vmatpush.xpose.msra.mxu0 %v450
        %468 = vmatmul.f32.gmra.mxu0 %v448
        %v469 = vpop.f32.mrf.mxu0
        %v470 = vadd.f32 %v441, %v469
        %471 = vdwg.mxu0
        %472 = vrot.lane.b32.xlu0 %v436, 96
        %v473 = vpop.permute.xlu0 %472
        %v474 = vsel %vm447, %v436, 0
        %v476 = vsel %vm447, %v473, 0
        %478 = vmatpush.xpose.msra.mxu0 0.0
        %479 = vmatpush.xpose.msra.mxu0 0.0
        %480 = vmatpush.xpose.msra.mxu0 0.0
        %481 = vmatpush.xpose.msra.mxu0 0.0
        %482 = vmatpush.xpose.msra.mxu0 0.0
        %483 = vmatpush.xpose.msra.mxu0 0.0
        %484 = vmatpush.xpose.msra.mxu0 0.0
        %485 = vmatpush.xpose.msra.mxu0 0.0
        %486 = vmatpush.xpose.msra.mxu0 0.0
        %487 = vmatpush.xpose.msra.mxu0 0.0
        %488 = vmatpush.xpose.msra.mxu0 0.0
        %489 = vmatpush.xpose.msra.mxu0 0.0
        %490 = vmatpush.xpose.msra.mxu0 0.0
        %491 = vmatpush.xpose.msra.mxu0 0.0
        %492 = vmatpush.xpose.msra.mxu0 0.0
        %493 = vmatpush.xpose.msra.mxu0 %v476
        %494 = vmatmul.f32.gmra.mxu0 %v474
        %v495 = vpop.f32.mrf.mxu0
        %v496 = vadd.f32 %v442, %v495
        %497 = vdwg.mxu0
        %498 = vrot.lane.b32.xlu0 %v438, 96
        %v499 = vpop.permute.xlu0 %498
        %v500 = vsel %vm447, %v438, 0
        %v502 = vsel %vm447, %v499, 0
        %504 = vmatpush.xpose.msra.mxu0 0.0
        %505 = vmatpush.xpose.msra.mxu0 0.0
        %506 = vmatpush.xpose.msra.mxu0 0.0
        %507 = vmatpush.xpose.msra.mxu0 0.0
        %508 = vmatpush.xpose.msra.mxu0 0.0
        %509 = vmatpush.xpose.msra.mxu0 0.0
        %510 = vmatpush.xpose.msra.mxu0 0.0
        %511 = vmatpush.xpose.msra.mxu0 0.0
        %512 = vmatpush.xpose.msra.mxu0 0.0
        %513 = vmatpush.xpose.msra.mxu0 0.0
        %514 = vmatpush.xpose.msra.mxu0 0.0
        %515 = vmatpush.xpose.msra.mxu0 0.0
        %516 = vmatpush.xpose.msra.mxu0 0.0
        %517 = vmatpush.xpose.msra.mxu0 0.0
        %518 = vmatpush.xpose.msra.mxu0 0.0
        %519 = vmatpush.xpose.msra.mxu0 %v502
        %520 = vmatmul.f32.gmra.mxu0 %v500
        %v521 = vpop.f32.mrf.mxu0
        %v522 = vadd.f32 %v443, %v521
        %523 = vdwg.mxu0
        %524 = vrot.lane.b32.xlu0 %v440, 96
        %v525 = vpop.permute.xlu0 %524
        %v526 = vsel %vm447, %v440, 0
        %v528 = vsel %vm447, %v525, 0
        %530 = vmatpush.xpose.msra.mxu0 0.0
        %531 = vmatpush.xpose.msra.mxu0 0.0
        %532 = vmatpush.xpose.msra.mxu0 0.0
        %533 = vmatpush.xpose.msra.mxu0 0.0
        %534 = vmatpush.xpose.msra.mxu0 0.0
        %535 = vmatpush.xpose.msra.mxu0 0.0
        %536 = vmatpush.xpose.msra.mxu0 0.0
        %537 = vmatpush.xpose.msra.mxu0 0.0
        %538 = vmatpush.xpose.msra.mxu0 0.0
        %539 = vmatpush.xpose.msra.mxu0 0.0
        %540 = vmatpush.xpose.msra.mxu0 0.0
        %541 = vmatpush.xpose.msra.mxu0 0.0
        %542 = vmatpush.xpose.msra.mxu0 0.0
        %543 = vmatpush.xpose.msra.mxu0 0.0
        %544 = vmatpush.xpose.msra.mxu0 0.0
        %545 = vmatpush.xpose.msra.mxu0 %v528
        %546 = vmatmul.f32.gmra.mxu0 %v526
        %v547 = vpop.f32.mrf.mxu0
        %v548 = vadd.f32 %v444, %v547
        %549 = vdwg.mxu0
        %v550 = vsel %vm447, %v470, -inf
        %551 = vmax.xlane.f32.xlu0 %v550
        %v552 = vpop.xlane.xlu0 %551
        %v553 = vsel %vm447, %v496, -inf
        %554 = vmax.xlane.f32.xlu0 %v553
        %v555 = vpop.xlane.xlu0 %554
        %v556 = vsel %vm447, %v522, -inf
        %557 = vmax.xlane.f32.xlu0 %v556
        %v558 = vpop.xlane.xlu0 %557
        %v559 = vsel %vm447, %v548, -inf
        %560 = vmax.xlane.f32.xlu0 %v559
        %v561 = vpop.xlane.xlu0 %560
        %v562 = vsub.f32 %v470, %v552
        %v563 = vsub.f32 %v496, %v555
        %v564 = vsub.f32 %v522, %v558
        %v565 = vsub.f32 %v548, %v561
        %v566 = vmul.f32 %v562, 1.442695
        %v567 = vpow.pop %v566
        %v568 = vmul.f32 %v563, 1.442695
        %v569 = vpow.pop %v568
        %v570 = vmul.f32 %v564, 1.442695
        %v571 = vpow.pop %v570
        %v572 = vmul.f32 %v565, 1.442695
        %v573 = vpow.pop %v572
        %v574 = vsel %vm447, %v567, 0.0
        %575 = vadd.xlane.f32.xlu0 %v574
        %v576 = vpop.xlane.xlu0 %575
        %v577 = vsel %vm447, %v569, 0.0
        %578 = vadd.xlane.f32.xlu0 %v577
        %v579 = vpop.xlane.xlu0 %578
        %v580 = vsel %vm447, %v571, 0.0
        %581 = vadd.xlane.f32.xlu0 %v580
        %v582 = vpop.xlane.xlu0 %581
        %v583 = vsel %vm447, %v573, 0.0
        %584 = vadd.xlane.f32.xlu0 %v583
        %v585 = vpop.xlane.xlu0 %584
        %v586 = vrcp.pop %v576
        %v587 = vmul.f32 %v576, %v586
        %v588 = vsub.f32 1.0, %v587
        %v589 = vmul.f32 %v586, %v588
        %v590 = vadd.f32 %v586, %v589
        %vm591 = vweird.f32 %v576
        %vm592 = vweird.f32 %v586
        %vm593 = vmor %vm591, %vm592
        %v594 = vsel %vm593, %v586, %v590
        %v595 = vand.u32 2147483647, %v576
        %vm596 = vcmp.eq.f32.partialorder %v595, 8.507059e+37
        %v597 = vand.u32 %v576, 2147483648
        %v598 = vor.u32 1.1754944e-38, %v597
        %v599 = vsel %vm596, %v598, %v594
        %v600 = vrcp.pop %v579
        %v601 = vmul.f32 %v579, %v600
        %v602 = vsub.f32 1.0, %v601
        %v603 = vmul.f32 %v600, %v602
        %v604 = vadd.f32 %v600, %v603
        %vm605 = vweird.f32 %v579
        %vm606 = vweird.f32 %v600
        %vm607 = vmor %vm605, %vm606
        %v608 = vsel %vm607, %v600, %v604
        %v609 = vand.u32 2147483647, %v579
        %vm610 = vcmp.eq.f32.partialorder %v609, 8.507059e+37
        %v611 = vand.u32 %v579, 2147483648
        %v612 = vor.u32 1.1754944e-38, %v611
        %v613 = vsel %vm610, %v612, %v608
        %v614 = vrcp.pop %v582
        %v615 = vmul.f32 %v582, %v614
        %v616 = vsub.f32 1.0, %v615
        %v617 = vmul.f32 %v614, %v616
        %v618 = vadd.f32 %v614, %v617
        %vm619 = vweird.f32 %v582
        %vm620 = vweird.f32 %v614
        %vm621 = vmor %vm619, %vm620
        %v622 = vsel %vm621, %v614, %v618
        %v623 = vand.u32 2147483647, %v582
        %vm624 = vcmp.eq.f32.partialorder %v623, 8.507059e+37
        %v625 = vand.u32 %v582, 2147483648
        %v626 = vor.u32 1.1754944e-38, %v625
        %v627 = vsel %vm624, %v626, %v622
        %v628 = vrcp.pop %v585
        %v629 = vmul.f32 %v585, %v628
        %v630 = vsub.f32 1.0, %v629
        %v631 = vmul.f32 %v628, %v630
        %v632 = vadd.f32 %v628, %v631
        %vm633 = vweird.f32 %v585
        %vm634 = vweird.f32 %v628
        %vm635 = vmor %vm633, %vm634
        %v636 = vsel %vm635, %v628, %v632
        %v637 = vand.u32 2147483647, %v585
        %vm638 = vcmp.eq.f32.partialorder %v637, 8.507059e+37
        %v639 = vand.u32 %v585, 2147483648
        %v640 = vor.u32 1.1754944e-38, %v639
        %v641 = vsel %vm638, %v640, %v636
        %v642 = vmul.f32 %v567, %v599
        %v643 = vmul.f32 %v569, %v613
        %v644 = vmul.f32 %v571, %v627
        %v645 = vmul.f32 %v573, %v641
        %646 = vrot.lane.b32.xlu0 %v432, 64
        %v647 = vpop.permute.xlu0 %646
        %v650 = vsel %vm447, %v642, 0
        %652 = vmatpush.msra.mxu0 0.0
        %653 = vmatpush.msra.mxu0 0.0
        %654 = vmatpush.msra.mxu0 0.0
        %655 = vmatpush.msra.mxu0 0.0
        %656 = vmatpush.msra.mxu0 0.0
        %657 = vmatpush.msra.mxu0 0.0
        %658 = vmatpush.msra.mxu0 0.0
        %659 = vmatpush.msra.mxu0 0.0
        %660 = vmatpush.msra.mxu0 0.0
        %661 = vmatpush.msra.mxu0 0.0
        %662 = vmatpush.msra.mxu0 0.0
        %663 = vmatpush.msra.mxu0 0.0
        %664 = vmatpush.msra.mxu0 0.0
        %665 = vmatpush.msra.mxu0 0.0
        %666 = vmatpush.msra.mxu0 0.0
        %667 = vmatpush.msra.mxu0 %v647
        %668 = vmatmul.f32.gmra.mxu0 %v650
        %v669 = vpop.f32.mrf.mxu0
        %v670 = vadd.f32 0.0, %v669
        %671 = vdwg.mxu0
        %672 = vrot.lane.b32.xlu0 %v436, 64
        %v673 = vpop.permute.xlu0 %672
        %v676 = vsel %vm447, %v643, 0
        %678 = vmatpush.msra.mxu0 0.0
        %679 = vmatpush.msra.mxu0 0.0
        %680 = vmatpush.msra.mxu0 0.0
        %681 = vmatpush.msra.mxu0 0.0
        %682 = vmatpush.msra.mxu0 0.0
        %683 = vmatpush.msra.mxu0 0.0
        %684 = vmatpush.msra.mxu0 0.0
        %685 = vmatpush.msra.mxu0 0.0
        %686 = vmatpush.msra.mxu0 0.0
        %687 = vmatpush.msra.mxu0 0.0
        %688 = vmatpush.msra.mxu0 0.0
        %689 = vmatpush.msra.mxu0 0.0
        %690 = vmatpush.msra.mxu0 0.0
        %691 = vmatpush.msra.mxu0 0.0
        %692 = vmatpush.msra.mxu0 0.0
        %693 = vmatpush.msra.mxu0 %v673
        %694 = vmatmul.f32.gmra.mxu0 %v676
        %v695 = vpop.f32.mrf.mxu0
        %v696 = vadd.f32 0.0, %v695
        %697 = vdwg.mxu0
        %698 = vrot.lane.b32.xlu0 %v438, 64
        %v699 = vpop.permute.xlu0 %698
        %v702 = vsel %vm447, %v644, 0
        %704 = vmatpush.msra.mxu0 0.0
        %705 = vmatpush.msra.mxu0 0.0
        %706 = vmatpush.msra.mxu0 0.0
        %707 = vmatpush.msra.mxu0 0.0
        %708 = vmatpush.msra.mxu0 0.0
        %709 = vmatpush.msra.mxu0 0.0
        %710 = vmatpush.msra.mxu0 0.0
        %711 = vmatpush.msra.mxu0 0.0
        %712 = vmatpush.msra.mxu0 0.0
        %713 = vmatpush.msra.mxu0 0.0
        %714 = vmatpush.msra.mxu0 0.0
        %715 = vmatpush.msra.mxu0 0.0
        %716 = vmatpush.msra.mxu0 0.0
        %717 = vmatpush.msra.mxu0 0.0
        %718 = vmatpush.msra.mxu0 0.0
        %719 = vmatpush.msra.mxu0 %v699
        %720 = vmatmul.f32.gmra.mxu0 %v702
        %v721 = vpop.f32.mrf.mxu0
        %v722 = vadd.f32 0.0, %v721
        %723 = vdwg.mxu0
        %724 = vrot.lane.b32.xlu0 %v440, 64
        %v725 = vpop.permute.xlu0 %724
        %v728 = vsel %vm447, %v645, 0
        %730 = vmatpush.msra.mxu0 0.0
        %731 = vmatpush.msra.mxu0 0.0
        %732 = vmatpush.msra.mxu0 0.0
        %733 = vmatpush.msra.mxu0 0.0
        %734 = vmatpush.msra.mxu0 0.0
        %735 = vmatpush.msra.mxu0 0.0
        %736 = vmatpush.msra.mxu0 0.0
        %737 = vmatpush.msra.mxu0 0.0
        %738 = vmatpush.msra.mxu0 0.0
        %739 = vmatpush.msra.mxu0 0.0
        %740 = vmatpush.msra.mxu0 0.0
        %741 = vmatpush.msra.mxu0 0.0
        %742 = vmatpush.msra.mxu0 0.0
        %743 = vmatpush.msra.mxu0 0.0
        %744 = vmatpush.msra.mxu0 0.0
        %745 = vmatpush.msra.mxu0 %v725
        %746 = vmatmul.f32.gmra.mxu0 %v728
        %v747 = vpop.f32.mrf.mxu0
        %v748 = vadd.f32 0.0, %v747
        %749 = vdwg.mxu0
        %751 = vrot.lane.b32.xlu0 %v696, 8
        %v752 = vpop.permute.xlu0 %751
        %755 = vrot.lane.b32.xlu0 %v722, 16
        %v756 = vpop.permute.xlu0 %755
        %759 = vrot.lane.b32.xlu0 %v748, 24
        %v760 = vpop.permute.xlu0 %759
        %v762 = vsel %vm447, %v670, %v752
        %vm763 = vcmask 130048
        %v764 = vsel %vm763, %v762, %v756
        %vm765 = vcmask 195584
        %v766 = vsel %vm765, %v764, %v760
        %v767 = vld [vmem:[#allocation5] sm:$0xff]
        %v768 = vld [vmem:[#allocation5 + $0x8] sm:$0xff]
        %v769 = vld [vmem:[#allocation5 + $0x10] sm:$0xff]
        %v770 = vld [vmem:[#allocation5 + $0x18] sm:$0xff]
        %v772 = vsel %vm378, %v766, 0
        %774 = vmatpush.msra.mxu0 0.0
        %775 = vmatpush.msra.mxu0 0.0
        %776 = vmatpush.msra.mxu0 0.0
        %777 = vmatpush.msra.mxu0 0.0
        %778 = vmatpush.msra.mxu0 0.0
        %779 = vmatpush.msra.mxu0 0.0
        %780 = vmatpush.msra.mxu0 0.0
        %781 = vmatpush.msra.mxu0 0.0
        %782 = vmatpush.msra.mxu0 0.0
        %783 = vmatpush.msra.mxu0 0.0
        %784 = vmatpush.msra.mxu0 0.0
        %785 = vmatpush.msra.mxu0 0.0
        %786 = vmatpush.msra.mxu0 %v770
        %787 = vmatpush.msra.mxu0 %v769
        %788 = vmatpush.msra.mxu0 %v768
        %789 = vmatpush.msra.mxu0 %v767
        %790 = vmatmul.f32.gmra.mxu0 %v772
        %v791 = vpop.f32.mrf.mxu0
        %v792 = vadd.f32 0.0, %v791
        %793 = vdwg.mxu0
        %v794 = vadd.f32 %v376, %v792
        %v795 = vmul.f32 %v794, %v794
        %v796 = vsel %vm378, %v795, 0.0
        %797 = vadd.xlane.f32.xlu0 %v796
        %v798 = vpop.xlane.xlu0 %797
        %v799 = vmul.f32 %v798, %v388
        %v800 = vadd.f32 %v799, 1e-06
        %v801 = vrsqrt.pop %v800
        %v802 = vmul.f32 %v801, %v800
        %v803 = vmul.f32 %v802, %v801
        %v804 = vmul.f32 0.5, %v803
        %v805 = vsub.f32 1.5, %v804
        %v806 = vmul.f32 %v801, %v805
        %vm807 = vweird.f32 %v800
        %vm808 = vweird.f32 %v801
        %vm809 = vmor %vm807, %vm808
        %v810 = vsel %vm809, %v801, %v806
        %v811 = vmul.f32 %v794, %v810
        %v812 = vld [vmem:[%s5] sm:$0x1]
        %v814 = vperm.slane %v812, 0
        %v816 = vmul.f32 %v811, %v814
        %v817 = vld [vmem:[#allocation7] sm:$0xff]
        %v818 = vld [vmem:[#allocation7 + $0x8] sm:$0xff]
        %v819 = vld [vmem:[#allocation7 + $0x10] sm:$0xff]
        %v820 = vld [vmem:[#allocation7 + $0x18] sm:$0xff]
        %v822 = vsel %vm378, %v816, 0
        %824 = vmatpush.msra.mxu0 0.0
        %825 = vmatpush.msra.mxu0 0.0
        %826 = vmatpush.msra.mxu0 0.0
        %827 = vmatpush.msra.mxu0 0.0
        %828 = vmatpush.msra.mxu0 0.0
        %829 = vmatpush.msra.mxu0 0.0
        %830 = vmatpush.msra.mxu0 0.0
        %831 = vmatpush.msra.mxu0 0.0
        %832 = vmatpush.msra.mxu0 0.0
        %833 = vmatpush.msra.mxu0 0.0
        %834 = vmatpush.msra.mxu0 0.0
        %835 = vmatpush.msra.mxu0 0.0
        %836 = vmatpush.msra.mxu0 %v820
        %837 = vmatpush.msra.mxu0 %v819
        %838 = vmatpush.msra.mxu0 %v818
        %839 = vmatpush.msra.mxu0 %v817
        %840 = vmatmul.f32.gmra.mxu0 %v822
        %v841 = vpop.f32.mrf.mxu0
        %v842 = vadd.f32 0.0, %v841
        %843 = vdwg.mxu0
        %v844 = vmax.f32 %v842, 0.0
        %v845 = vld [vmem:[%s7] sm:$0xff]
        %v846 = vld [vmem:[%s7 + $0x8] sm:$0xff]
        %v847 = vld [vmem:[%s7 + $0x10] sm:$0xff]
        %v848 = vld [vmem:[%s7 + $0x18] sm:$0xff]
        %v849 = vld [vmem:[%s7 + $0x20] sm:$0xff]
        %v850 = vld [vmem:[%s7 + $0x28] sm:$0xff]
        %v851 = vld [vmem:[%s7 + $0x30] sm:$0xff]
        %v852 = vld [vmem:[%s7 + $0x38] sm:$0xff]
        %vm853 = vcmask 523264
        %v855 = vsel %vm853, %v844, 0
        %857 = vmatpush.msra.mxu0 0.0
        %858 = vmatpush.msra.mxu0 0.0
        %859 = vmatpush.msra.mxu0 0.0
        %860 = vmatpush.msra.mxu0 0.0
        %861 = vmatpush.msra.mxu0 0.0
        %862 = vmatpush.msra.mxu0 0.0
        %863 = vmatpush.msra.mxu0 0.0
        %864 = vmatpush.msra.mxu0 0.0
        %865 = vmatpush.msra.mxu0 %v852
        %866 = vmatpush.msra.mxu0 %v851
        %867 = vmatpush.msra.mxu0 %v850
        %868 = vmatpush.msra.mxu0 %v849
        %869 = vmatpush.msra.mxu0 %v848
        %870 = vmatpush.msra.mxu0 %v847
        %871 = vmatpush.msra.mxu0 %v846
        %872 = vmatpush.msra.mxu0 %v845
        %873 = vmatmul.f32.gmra.mxu0 %v855
        %v874 = vpop.f32.mrf.mxu0
        %v875 = vadd.f32 0.0, %v874
        %876 = vdwg.mxu0
        %v877 = vadd.f32 %v794, %v875
        %878 = vst.msk [vmem:[%s370] sm:$0xff] %vm378, %v877
        %s879 = sand.u32 %s212, 1
        %s880 = scalar_lea.sflag [#allocation4], %s879
        %s881 = sand.u32 %s212, 1
        %s882 = smul.addr %s881, 8
        %s883 = scalar_lea.vmem [#allocation8], %s882
        // Predicated region
        $region65: #{tpu_custom_call.1} parent=51 // pred_check
          %p884 = pneg %p222
        $region66: #{tpu_custom_call.1} parent=51 // pred_check_branch
          %886 = sbr.rel (%p884) target = $region68
        $region67: #{tpu_custom_call.1} parent=51 // pred_region
          %888 = vsyncadd %s880, 0
          %s889 = smul.addr %s26, 8
          %s890 = scalar_lea.hbm %s8, %s889
          %s892 = sshll.u32 %s883, 4
          %s893 = int_to_ptr.vmem [resolvable:$true] %s892
          %s894 = sshll.u32 %s890, 4
          %s895 = int_to_ptr.hbm [resolvable:$true] %s894
          %897 = dma.vmem_to_hbm [thread:$0]  %s893, 128, %s895, %s880
        $region68: #{tpu_custom_call.1} parent=51 // pred_fallthru
          _
      $region52: #{tpu_custom_call.1} parent=5 // pred_fallthru
        _
      %p898 = scmp.le.s32.totalorder 2, %s21
      // Predicated region
      $region69: #{tpu_custom_call.1} parent=5 // pred_check
        %p899 = pneg %p898
      $region70: #{tpu_custom_call.1} parent=5 // pred_check_branch
        %901 = sbr.rel (%p899) target = $region72
      $region71: #{tpu_custom_call.1} parent=5 // pred_region
        %s902 = ssub.s32 %s21, 2
        // Predicated region
        $region73: #{tpu_custom_call.1} parent=71 // pred_check
          %p903 = pneg %p228
        $region74: #{tpu_custom_call.1} parent=71 // pred_check_branch
          %905 = sbr.rel (%p903) target = $region76
        $region75: #{tpu_custom_call.1} parent=71 // pred_region
          %s906 = sand.u32 %s213, 1
          %s907 = scalar_lea.sflag [#allocation4], %s906
          %s908 = sand.u32 %s213, 1
          %s909 = smul.addr %s908, 8
          %s910 = scalar_lea.vmem [#allocation8], %s909
          %912 = dma.done %s907, 128
        $region76: #{tpu_custom_call.1} parent=71 // pred_fallthru
          _
      $region72: #{tpu_custom_call.1} parent=5 // pred_fallthru
        _
    $region6: #{tpu_custom_call.1} parent=1 // loop_footer
      %s25 = sadd.s32 1, %s21
    $region7: #{tpu_custom_call.1} parent=1 // loop_footer_branch
      %20 = sbr.rel target = $region3
    $region8: #{tpu_custom_call.1} parent=1 // loop_exit
      _
    %913 = vsyncpa [#allocation3], 1
    %s914 = scalar_lea.sflag [#allocation3], 1
    %915 = vsyncpa %s914, 1
    %916 = vsyncpa [#allocation6], 1
    %917 = vsyncpa [#allocation4], 1
    %s918 = scalar_lea.sflag [#allocation4], 1
    %919 = vsyncpa %s918, 1

</llo_original>
